<compile_context>
chip_gen: v6e
topology: v6e:2x2x1
jax: 0.10.0
libtpu: 0.0.40
codegen_flags: <defaults>
</compile_context>

<pallas_src>
import functools

import jax
import jax.numpy as jnp
from jax.experimental import pallas as pl
from jax.experimental.pallas import tpu as pltpu


def _round_up(x, m):
    return ((x + m - 1) // m) * m


def _cdiv(a, b):
    return (a + b - 1) // b


def _vmem_budget_and_limit():
    """Generation-aware VMEM numbers: planning budget + compiler limit."""
    try:
        cap = int(pltpu.get_tpu_info().vmem_capacity_bytes)
    except Exception:
        cap = 64 * 1024 * 1024  # conservative fallback (v7x per-TC size)
    vmem_limit = (cap * 3) // 4      # leave headroom for compiler scratch
    tiling_budget = (cap * 6) // 10  # what the tiler plans against
    return tiling_budget, vmem_limit


def _choose_tile_m(rows8, c_in, c_out, w_itemsize, budget_bytes):
    """Largest balanced row tile that fits the VMEM budget.

    Accounting is conservative (vreg-padded sizes, double-buffered weight /
    x-tile / out-tile).  Step count is kept even when > 1 so the "parallel"
    row axis shards evenly across both TensorCores on v7x.
    """
    cin_v = _round_up(max(c_in, 1), 128)
    cout_v = _round_up(max(c_out, 1), 128)
    resident = 2 * cin_v * cout_v * w_itemsize + 2 * cout_v * 4  # weight+bias
    avail = budget_bytes - resident
    if avail <= 0:
        # TODO(synk): fall back to a class-split (online-softmax) kernel here.
        raise ValueError(
            "CTCHead weight (%d B) does not fit the VMEM tiling budget "
            "(%d B); a class-split kernel is required." % (resident, budget_bytes))
    per_row = 2 * (cin_v * 4 + cout_v * 4)  # dbl-buffered x (f32) + out (f32)
    cap = min(1024, max(8, avail // per_row))
    cap = (cap // 8) * 8

    if rows8 <= cap:
        n_steps = 2 if rows8 >= 256 else 1
    else:
        n_steps = _cdiv(rows8, cap)
        if n_steps % 2:
            n_steps += 1  # even step count -> both TCs get equal work (v7x)
    return _round_up(_cdiv(rows8, n_steps), 8)


def _ctc_head_kernel(x_ref, w_ref, b_ref, o_ref):
    # x_ref: (TM, C_in)  w_ref: (C_in, C_out)  b_ref: (1, C_out) f32
    # o_ref: (TM, C_out)
    a = x_ref[...].astype(w_ref.dtype)          # in-kernel cast (VPU, hidden)
    logits = jnp.dot(a, w_ref[...], preferred_element_type=jnp.float32)
    logits = logits + b_ref[...]                # bias broadcast over rows, f32
    # softmax over the class axis (PyTorch dim=2 after un-flattening)
    m = jnp.max(logits, axis=-1, keepdims=True)     # XLU
    e = jnp.exp(logits - m)                         # EUP
    denom = jnp.sum(e, axis=-1, keepdims=True)      # XLU
    o_ref[...] = (e / denom).astype(o_ref.dtype)    # exact normalization


def prepare_ctc_head_params(weight, bias, compute_dtype=jnp.float32):
    """One-time param prep (hoisted out of the per-call path).

    weight: (C_out, C_in) PyTorch nn.Linear layout.  Returns
      w_t: (C_in, C_out) in compute_dtype (f32 or bf16),
      b2d: (1, C_out) f32.
    """
    w_t = jnp.asarray(weight).T.astype(compute_dtype)
    b2d = jnp.asarray(bias).astype(jnp.float32).reshape(1, -1)
    return w_t, b2d


@functools.partial(jax.jit, static_argnames=("tile_m", "out_dtype"))
def ctc_head_forward(x, w_t, b2d, *, tile_m=None, out_dtype=jnp.float32):
    """Eval-mode CTCHead forward: softmax(x @ w_t + b, axis=-1).

    Args:
      x:   (B, T, C_in) float32 (DMA'd as-is; cast to w_t.dtype in-kernel).
      w_t: (C_in, C_out) prepared via prepare_ctc_head_params (f32 or bf16).
      b2d: (1, C_out) float32.
      out_dtype: output dtype (f32 default; bf16 halves the dominant HBM
        write stream if the downstream CTC decoder tolerates it).
    Returns:
      predicts: (B, T, C_out), softmax over the class axis.
    """
    B, T, C_in = x.shape
    c_in_w, C_out = w_t.shape
    assert c_in_w == C_in, "weight / input channel mismatch"

    rows = B * T
    rows8 = _round_up(rows, 8)

    tiling_budget, vmem_limit = _vmem_budget_and_limit()
    if tile_m is None:
        tile_m = _choose_tile_m(rows8, C_in, C_out, w_t.dtype.itemsize,
                                tiling_budget)
    tile_m = min(tile_m, rows8)

    x2d = x.reshape(rows, C_in)
    if rows8 != rows:
        x2d = jnp.pad(x2d, ((0, rows8 - rows), (0, 0)))

    grid = (_cdiv(rows8, tile_m),)

    out2d = pl.pallas_call(
        _ctc_head_kernel,
        out_shape=jax.ShapeDtypeStruct((rows8, C_out), out_dtype),
        grid_spec=pltpu.PrefetchScalarGridSpec(
            num_scalar_prefetch=0,
            grid=grid,
            in_specs=[
                # Row tiles of x; last block dim == full C_in (no HBM pad).
                pl.BlockSpec((tile_m, C_in), lambda i: (i, 0)),
                # VMEM-resident weight and bias (constant index_map).
                pl.BlockSpec((C_in, C_out), lambda i: (0, 0)),
                pl.BlockSpec((1, C_out), lambda i: (0, 0)),
            ],
            # Last block dim == full C_out: no class padding, no post-slice.
            out_specs=pl.BlockSpec((tile_m, C_out), lambda i: (i, 0)),
        ),
        compiler_params=pltpu.CompilerParams(
            dimension_semantics=("parallel",),
            vmem_limit_bytes=vmem_limit,
        ),
    )(x2d, w_t, b2d)

    if rows8 != rows:
        out2d = out2d[:rows]
    return out2d.reshape(B, T, C_out)


def _reference(x, weight, bias):
    logits = jnp.einsum("btc,oc->bto", x, weight) + bias
    return jax.nn.softmax(logits, axis=2)


if __name__ == "__main__":
    # Small shapes consistent with CTCHead: batch=2, seq=8, in_channels=32,
    # out_channels=64 (vocab size incl. blank). mid_channels=None branch.
    B, T, C_in, C_out = 2, 8, 32, 64

    key = jax.random.PRNGKey(0)
    kx, kw, kb = jax.random.split(key, 3)
    x = jax.random.normal(kx, (B, T, C_in), jnp.float32)
    bound = 1.0 / (C_in ** 0.5)
    weight = jax.random.uniform(kw, (C_out, C_in), jnp.float32, -bound, bound)
    bias = jax.random.uniform(kb, (C_out,), jnp.float32, -bound, bound)

    ref = _reference(x, weight, bias)

    # f32 operand path.
    w_f32, b2d = prepare_ctc_head_params(weight, bias, jnp.float32)
    out = jax.block_until_ready(ctc_head_forward(x, w_f32, b2d))
    assert out.shape == (B, T, C_out)
    assert jnp.allclose(out, ref, atol=2e-4, rtol=2e-4), "f32 mismatch vs ref"
    assert jnp.allclose(jnp.sum(out, axis=2), 1.0, atol=1e-3)

    # bf16 operand path (recommended on all generations: bf16-native MXU,
    # half the resident weight).  Accumulation and softmax stay f32.
    w_bf16, b2d_bf = prepare_ctc_head_params(weight, bias, jnp.bfloat16)
    out_bf = jax.block_until_ready(ctc_head_forward(x, w_bf16, b2d_bf))
    assert out_bf.shape == (B, T, C_out)
    assert jnp.allclose(out_bf, ref, atol=2e-2, rtol=2e-2), "bf16 mismatch"
    assert jnp.allclose(jnp.sum(out_bf, axis=2), 1.0, atol=1e-3)

    print("KERNEL_OK")
</pallas_src>

<mosaic_0001>
module attributes {stable_mosaic.version = 11 : i64} {
  func.func @_ctc_head_kernel(%arg0: i32, %arg1: memref<16x32xf32, #tpu.memory_space<vmem>>, %arg2: memref<32x64xf32, #tpu.memory_space<vmem>>, %arg3: memref<1x64xf32, #tpu.memory_space<vmem>>, %arg4: memref<16x64xf32, #tpu.memory_space<vmem>>) attributes {dimension_semantics = [#tpu.dimension_semantics<parallel>], iteration_bounds = array<i64: 1>, scalar_prefetch = 0 : i64, scratch_operands = 0 : i64, tpu.core_type = #tpu.core_type<tc>, window_params = [{transform_indices = @transform_0, window_bounds = array<i64: 16, 32>}, {pipeline_mode = #tpu.pipeline_mode<synchronous>, transform_indices = @transform_1, window_bounds = array<i64: 32, 64>}, {pipeline_mode = #tpu.pipeline_mode<synchronous>, transform_indices = @transform_2, window_bounds = array<i64: 1, 64>}, {transform_indices = @transform_3, window_bounds = array<i64: 16, 64>}]} {
    %c0 = arith.constant 0 : index
    %c0_0 = arith.constant 0 : index
    %0 = vector.load %arg1[%c0, %c0_0] : memref<16x32xf32, #tpu.memory_space<vmem>>, vector<16x32xf32>
    %c0_1 = arith.constant 0 : index
    %c0_2 = arith.constant 0 : index
    %1 = vector.load %arg2[%c0_1, %c0_2] : memref<32x64xf32, #tpu.memory_space<vmem>>, vector<32x64xf32>
    %cst = arith.constant dense<0.000000e+00> : vector<16x64xf32>
    %2 = tpu.matmul %0, %1, %cst {dimension_numbers = #tpu.dot_dimension_numbers<[1], [0], [0], [1], [0, 0, 1, 1], [], []>} : vector<16x32xf32>, vector<32x64xf32>, vector<16x64xf32> -> vector<16x64xf32>
    %c0_3 = arith.constant 0 : index
    %c0_4 = arith.constant 0 : index
    %3 = vector.load %arg3[%c0_3, %c0_4] : memref<1x64xf32, #tpu.memory_space<vmem>>, vector<1x64xf32>
    %4 = vector.broadcast %3 : vector<1x64xf32> to vector<16x64xf32>
    %5 = arith.addf %2, %4 : vector<16x64xf32>
    %cst_5 = arith.constant dense<0xFF800000> : vector<16xf32>
    %6 = vector.multi_reduction <maximumf>, %5, %cst_5 [1] : vector<16x64xf32> to vector<16xf32>
    %7 = vector.shape_cast %6 : vector<16xf32> to vector<16x1xf32>
    %8 = vector.broadcast %7 : vector<16x1xf32> to vector<16x64xf32>
    %9 = arith.subf %5, %8 : vector<16x64xf32>
    %10 = math.exp %9 : vector<16x64xf32>
    %cst_6 = arith.constant dense<0.000000e+00> : vector<16xf32>
    %11 = vector.multi_reduction <add>, %10, %cst_6 [1] : vector<16x64xf32> to vector<16xf32>
    %12 = vector.shape_cast %11 : vector<16xf32> to vector<16x1xf32>
    %13 = vector.broadcast %12 : vector<16x1xf32> to vector<16x64xf32>
    %14 = arith.divf %10, %13 : vector<16x64xf32>
    %c0_7 = arith.constant 0 : index
    %c0_8 = arith.constant 0 : index
    %15 = vector.load %arg4[%c0_7, %c0_8] : memref<16x64xf32, #tpu.memory_space<vmem>>, vector<16x64xf32>
    tpu.vector_store %arg4[%c0_7, %c0_8], %14 {strides = array<i32>} : memref<16x64xf32, #tpu.memory_space<vmem>>, vector<16x64xf32>,
    return
  }
  func.func @transform_0(%arg0: i32) -> (i32, i32) {
    %c0_i32 = arith.constant 0 : i32
    %c0_i32_0 = arith.constant 0 : i32
    return %arg0, %c0_i32 : i32, i32
  }
  func.func @transform_1(%arg0: i32) -> (i32, i32) {
    %c0_i32 = arith.constant 0 : i32
    %c0_i32_0 = arith.constant 0 : i32
    %c0_i32_1 = arith.constant 0 : i32
    return %c0_i32, %c0_i32_0 : i32, i32
  }
  func.func @transform_2(%arg0: i32) -> (i32, i32) {
    %c0_i32 = arith.constant 0 : i32
    %c0_i32_0 = arith.constant 0 : i32
    %c0_i32_1 = arith.constant 0 : i32
    return %c0_i32, %c0_i32_0 : i32, i32
  }
  func.func @transform_3(%arg0: i32) -> (i32, i32) {
    %c0_i32 = arith.constant 0 : i32
    %c0_i32_0 = arith.constant 0 : i32
    return %arg0, %c0_i32 : i32, i32
  }
}

</mosaic_0001>

<llo_original>
// kernel: ctc_head_forward.1
$region0: #{ctc_head_forward.1}
  #allocation0 [shape = 'u32[]', space=smem, size = 0x4, offset = 0x4, fixed_abs, tag = 'smem constant byte address 0x4 - core index']
  #allocation1 [shape = 'u32[144,128]{1,0:T(1,128)}', space=vmem, size = 0x12000, scoped, tag = 'internal scratch']
  %s0 = inlined_call_operand.hbm [shape: f32[16,32], index: 0, kind: input, shape index: {}]
  %s1 = inlined_call_operand.hbm [shape: f32[32,64], index: 1, kind: input, shape index: {}]
  %s2 = inlined_call_operand.vmem [shape: f32[1,64], index: 2, kind: input, shape index: {}]
  %s3 = inlined_call_operand.hbm [shape: f32[16,64], index: 3, kind: output, shape index: {}]
  %s4 = sld [smem:[#allocation0]]
  $region30: #{ctc_head_forward.1} parent=0
    _
  %s6 = ssub.s32 1, %s4
  %s7 = scalar_select 0, %s6, %s4
  $region1: #{ctc_head_forward.1} parent=0
    #allocation2 [shape = 'u8[8192]{0}', space=vmem, size = 0x2000, scoped, tag = 'input window, operand 0, single buffered']
    #allocation3 [shape = 's32[1]{0}', space=sflag, size = 0x4, scoped, tag = 'scoped memory for ctc_head_forward.1']
    #allocation4 [shape = 's32[1]{0}', space=sflag, size = 0x4, scoped, tag = 'scoped memory for ctc_head_forward.1']
    #allocation5 [shape = 'u8[16384]{0}', space=vmem, size = 0x4000, scoped, tag = 'input window, operand 1, single buffered']
    #allocation6 [shape = 's32[1]{0}', space=sflag, size = 0x4, scoped, tag = 'scoped memory for ctc_head_forward.1']
    #allocation7 [shape = 'u8[8192]{0}', space=vmem, size = 0x2000, scoped, tag = 'output window, operand 0, single buffered']
    %8 = vsyncpa [#allocation3], 0
    %9 = vsyncpa [#allocation6], 0
    %10 = vsyncpa [#allocation4], 0
    // Predicated region
    $region2: #{ctc_head_forward.1} parent=1 // pred_check
      _
    $region3: #{ctc_head_forward.1} parent=1 // pred_check_branch
      %12 = sbr.rel (0) target = $region5
    $region4: #{ctc_head_forward.1} parent=1 // pred_region
      %s14 = ssub.s32 256, 256
      %15 = vsyncadd [#allocation3], %s14
      %s16 = sshll.u32 [#allocation2], 4
      %s17 = int_to_ptr.vmem [resolvable:$true] %s16
      %22 = dma.hbm_to_vmem [thread:$0]  %s0, 256, %s17, [#allocation3], 128, 128, 8
    $region5: #{ctc_head_forward.1} parent=1 // pred_fallthru
      _
    // Predicated region
    $region6: #{ctc_head_forward.1} parent=1 // pred_check
      _
    $region7: #{ctc_head_forward.1} parent=1 // pred_check_branch
      %24 = sbr.rel (0) target = $region9
    $region8: #{ctc_head_forward.1} parent=1 // pred_region
      %s26 = ssub.s32 512, 512
      %27 = vsyncadd [#allocation6], %s26
      %s28 = sshll.u32 [#allocation5], 4
      %s29 = int_to_ptr.vmem [resolvable:$true] %s28
      %34 = dma.hbm_to_vmem [thread:$0]  %s1, 512, %s29, [#allocation6], 128, 128, 8
    $region9: #{ctc_head_forward.1} parent=1 // pred_fallthru
      _
    // Predicated region
    $region10: #{ctc_head_forward.1} parent=1 // pred_check
      _
    $region11: #{ctc_head_forward.1} parent=1 // pred_check_branch
      %36 = sbr.rel (0) target = $region13
    $region12: #{ctc_head_forward.1} parent=1 // pred_region
      _
    $region13: #{ctc_head_forward.1} parent=1 // pred_fallthru
      _
    // Predicated region
    $region14: #{ctc_head_forward.1} parent=1 // pred_check
      _
    $region15: #{ctc_head_forward.1} parent=1 // pred_check_branch
      %38 = sbr.rel (0) target = $region17
    $region16: #{ctc_head_forward.1} parent=1 // pred_region
      %39 = dma.done [#allocation3], 256
    $region17: #{ctc_head_forward.1} parent=1 // pred_fallthru
      _
    // Predicated region
    $region18: #{ctc_head_forward.1} parent=1 // pred_check
      _
    $region19: #{ctc_head_forward.1} parent=1 // pred_check_branch
      %41 = sbr.rel (0) target = $region21
    $region20: #{ctc_head_forward.1} parent=1 // pred_region
      %42 = dma.done [#allocation6], 512
    $region21: #{ctc_head_forward.1} parent=1 // pred_fallthru
      _
    %v43 = vld [vmem:[#allocation2] sm:$0xff]
    %v44 = vld [vmem:[#allocation2 + $0x8] sm:$0xff]
    %v45 = vld [vmem:[#allocation5] sm:$0xff]
    %v46 = vld [vmem:[#allocation5 + $0x8] sm:$0xff]
    %v47 = vld [vmem:[#allocation5 + $0x10] sm:$0xff]
    %v48 = vld [vmem:[#allocation5 + $0x18] sm:$0xff]
    %v49 = vld [vmem:[%s2] sm:$0x1]
    %v51 = vlaneseq
    %v52 = vshrl.u32 %v51, 7
    %v53 = vsub.s32 0, %v52
    %v54 = vrot.slane %v49, %v53
    %vm56 = vcmask 261120
    %v58 = vsel %vm56, %v43, 0
    %v61 = vsel %vm56, %v44, 0
    %63 = vmatprep.subr.mxu0 0.0
    %64 = vmatpush1.msra.mxu0 0.0
    %65 = vmatprep.subr.mxu0 0.0
    %66 = vmatpush1.msra.mxu0 0.0
    %67 = vmatprep.subr.mxu0 0.0
    %68 = vmatpush1.msra.mxu0 0.0
    %69 = vmatprep.subr.mxu0 0.0
    %70 = vmatpush1.msra.mxu0 0.0
    %71 = vmatprep.subr.mxu0 0.0
    %72 = vmatpush1.msra.mxu0 0.0
    %73 = vmatprep.subr.mxu0 0.0
    %74 = vmatpush1.msra.mxu0 0.0
    %75 = vmatprep.subr.mxu0 0.0
    %76 = vmatpush1.msra.mxu0 0.0
    %77 = vmatprep.subr.mxu0 0.0
    %78 = vmatpush1.msra.mxu0 0.0
    %79 = vmatprep.subr.mxu0 0.0
    %80 = vmatpush1.msra.mxu0 0.0
    %81 = vmatprep.subr.mxu0 0.0
    %82 = vmatpush1.msra.mxu0 0.0
    %83 = vmatprep.subr.mxu0 0.0
    %84 = vmatpush1.msra.mxu0 0.0
    %85 = vmatprep.subr.mxu0 0.0
    %86 = vmatpush1.msra.mxu0 0.0
    %87 = vmatprep.subr.mxu0 0.0
    %88 = vmatpush1.msra.mxu0 %v48
    %89 = vmatprep.subr.mxu0 0.0
    %90 = vmatpush1.msra.mxu0 %v47
    %91 = vmatprep.subr.mxu0 0.0
    %92 = vmatpush1.msra.mxu0 %v46
    %93 = vmatprep.subr.mxu0 0.0
    %94 = vmatpush1.msra.mxu0 %v45
    %95 = vmatprep.subr.mxu0 0.0
    %96 = vmatpush2.msra.mxu0 0.0
    %97 = vmatprep.subr.mxu0 0.0
    %98 = vmatpush2.msra.mxu0 0.0
    %99 = vmatprep.subr.mxu0 0.0
    %100 = vmatpush2.msra.mxu0 0.0
    %101 = vmatprep.subr.mxu0 0.0
    %102 = vmatpush2.msra.mxu0 0.0
    %103 = vmatprep.subr.mxu0 0.0
    %104 = vmatpush2.msra.mxu0 0.0
    %105 = vmatprep.subr.mxu0 0.0
    %106 = vmatpush2.msra.mxu0 0.0
    %107 = vmatprep.subr.mxu0 0.0
    %108 = vmatpush2.msra.mxu0 0.0
    %109 = vmatprep.subr.mxu0 0.0
    %110 = vmatpush2.msra.mxu0 0.0
    %111 = vmatprep.subr.mxu0 0.0
    %112 = vmatpush2.msra.mxu0 0.0
    %113 = vmatprep.subr.mxu0 0.0
    %114 = vmatpush2.msra.mxu0 0.0
    %115 = vmatprep.subr.mxu0 0.0
    %116 = vmatpush2.msra.mxu0 0.0
    %117 = vmatprep.subr.mxu0 0.0
    %118 = vmatpush2.msra.mxu0 0.0
    %119 = vmatprep.subr.mxu0 0.0
    %120 = vmatpush2.msra.mxu0 0.0
    %121 = vmatprep.subr.mxu0 0.0
    %122 = vmatpush2.msra.mxu0 0.0
    %123 = vmatprep.subr.mxu0 0.0
    %124 = vmatpush2.msra.mxu0 0.0
    %125 = vmatprep.subr.mxu0 0.0
    %126 = vmatpush2.msra.mxu0 0.0
    %127 = vmatprep.mubr.f32.mxu0 0.0
    %128 = vmatmul.mubr.f32.gmra.mxu0 %v58
    %v129 = vpop.f32.mrf.mxu0
    %v130 = vadd.f32 %v54, %v129
    %v131 = vpop.f32.mrf.mxu0
    %132 = vmatprep.mubr.f32.mxu0 0.0
    %133 = vmatmul.mubr.f32.gmra.mxu0 %v61
    %v134 = vpop.f32.mrf.mxu0
    %v135 = vadd.f32 %v54, %v134
    %v136 = vpop.f32.mrf.mxu0
    %137 = vdwg.mxu0
    %vm138 = vcmask 523264
    %v139 = vsel %vm138, %v130, -inf
    %140 = vmax.xlane.f32.xlu0 %v139
    %v141 = vpop.xlane.xlu0 %140
    %v142 = vsel %vm138, %v135, -inf
    %143 = vmax.xlane.f32.xlu0 %v142
    %v144 = vpop.xlane.xlu0 %143
    %v145 = vsub.f32 %v130, %v141
    %v146 = vsub.f32 %v135, %v144
    %v147 = vmul.f32 %v145, 1.442695
    %v148 = vpow.pop %v147
    %v149 = vmul.f32 %v146, 1.442695
    %v150 = vpow.pop %v149
    %v151 = vsel %vm138, %v148, 0.0
    %152 = vadd.xlane.f32.xlu0 %v151
    %v153 = vpop.xlane.xlu0 %152
    %v154 = vsel %vm138, %v150, 0.0
    %155 = vadd.xlane.f32.xlu0 %v154
    %v156 = vpop.xlane.xlu0 %155
    %v157 = vrcp.pop %v153
    %v158 = vmul.f32 %v148, %v157
    %v159 = vrcp.pop %v156
    %v160 = vmul.f32 %v150, %v159
    %161 = vst.msk [vmem:[#allocation7] sm:$0xff] %vm138, %v158
    %162 = vst.msk [vmem:[#allocation7 + $0x8] sm:$0xff] %vm138, %v160
    // Predicated region
    $region22: #{ctc_head_forward.1} parent=1 // pred_check
      _
    $region23: #{ctc_head_forward.1} parent=1 // pred_check_branch
      %164 = sbr.rel (0) target = $region25
    $region24: #{ctc_head_forward.1} parent=1 // pred_region
      %s166 = ssub.s32 256, 256
      %167 = vsyncadd [#allocation4], %s166
      %s168 = sshll.u32 [#allocation7], 4
      %s169 = int_to_ptr.vmem [resolvable:$true] %s168
      %174 = dma.vmem_to_hbm [thread:$0]  %s169, 256, %s3, [#allocation4], 128, 128, 8
    $region25: #{ctc_head_forward.1} parent=1 // pred_fallthru
      _
    // Predicated region
    $region26: #{ctc_head_forward.1} parent=1 // pred_check
      _
    $region27: #{ctc_head_forward.1} parent=1 // pred_check_branch
      %176 = sbr.rel (0) target = $region29
    $region28: #{ctc_head_forward.1} parent=1 // pred_region
      %177 = dma.done [#allocation4], 256
    $region29: #{ctc_head_forward.1} parent=1 // pred_fallthru
      _
    %178 = vsyncpa [#allocation3], 1
    %179 = vsyncpa [#allocation6], 1
    %180 = vsyncpa [#allocation4], 1

</llo_original>
